<compile_context>
chip_gen: v5e
topology: v5e:2x2
jax: 0.10.0
libtpu: 0.0.40
codegen_flags: <defaults>
</compile_context>

<pallas_src>
import jax
import jax.numpy as jnp
from jax.experimental import pallas as pl
from jax.experimental.pallas import tpu as pltpu

_MIB = 1024 * 1024


# ----------------------------------------------------------------------------
# Generation gating / tiling helpers
# ----------------------------------------------------------------------------
def _generation_params(num_inputs):
    """Per-buffer block bytes, scoped-VMEM limit and minimum grid steps."""
    vmem_cap = 128 * _MIB
    try:
        info = pltpu.get_tpu_info()
        vmem_cap = int(getattr(info, "vmem_capacity_bytes", vmem_cap))
    except Exception:  # not resolvable (e.g. interpret mode): conservative
        pass
    if vmem_cap <= 64 * _MIB:
        # v7x-class: fast HBM -> larger blocks to amortize per-step overhead,
        # but conservative scoped limit (64 MiB physical VMEM per TC), and
        # guarantee >= 4 grid steps so both TensorCores get work.
        per_buf = (8 if num_inputs == 1 else 4) * _MIB
        return per_buf, 32 * _MIB, 4
    # v5e / v6e: 128 MiB physical VMEM, single TensorCore.
    return 4 * _MIB, 64 * _MIB, 1


def _choose_tiling(n_elems, t, itemsize, batch, per_buf_bytes, min_steps):
    """Tile the flattened per-frame axis as `rows` of 128 lanes.

    Returns (block_rows, n_tiles, rows_pad): input block is
    (1, T, block_rows, 128) with block_rows a multiple of 8 and
    rows_pad = block_rows * n_tiles >= ceil(N / 128).
    """
    rows = pl.cdiv(n_elems, 128)
    per_row_bytes = t * 128 * itemsize
    max_block_rows = max(8, (per_buf_bytes // per_row_bytes) // 8 * 8)
    n_tiles = pl.cdiv(rows, max_block_rows)
    # v7x megacore: make sure there are enough grid steps to shard across TCs.
    while batch * n_tiles < min_steps and n_tiles < pl.cdiv(rows, 8):
        n_tiles += 1
    block_rows = ((pl.cdiv(rows, n_tiles) + 7) // 8) * 8
    return block_rows, n_tiles, block_rows * n_tiles


def _rows_for_tiles(n_elems, n_tiles):
    return ((pl.cdiv(pl.cdiv(n_elems, 128), n_tiles) + 7) // 8) * 8


def _pad_to_rows(x_btn, rows_pad):
    """Zero-pad flat frame axis to rows_pad*128 and reshape to (B,T,rows,128)."""
    b, t, n = x_btn.shape
    n_pad = rows_pad * 128
    if n_pad != n:
        x_btn = jnp.pad(x_btn, ((0, 0), (0, 0), (0, n_pad - n)))
    return x_btn.reshape(b, t, rows_pad, 128)


# ----------------------------------------------------------------------------
# Kernels
# ----------------------------------------------------------------------------
def _frame_diff_kernel(pred_ref, frame_ref):
    """Per (batch, n-tile) block: sum_t sum |x[t+1] - x[t]| over the tile.

    pred_ref:  (1, T, block_rows, 128) native dtype.
    frame_ref: (1, 1, 8, 128) lane-dense scalar-broadcast partial.
    """
    t = pred_ref.shape[1]
    prev = pred_ref[0, 0, :, :].astype(jnp.float32)
    acc = jnp.zeros((), jnp.float32)
    for i in range(1, t):                       # pairwise walk, one upcast/frame
        cur = pred_ref[0, i, :, :].astype(jnp.float32)
        acc = acc + jnp.sum(jnp.abs(cur - prev))
        prev = cur
    frame_ref[0, 0, :, :] = jnp.full((8, 128), acc, jnp.float32)


def _fused_kernel(pred_ref, feat_ref, frame_ref, dot_ref, norm_ref):
    """Fused frame-diff + feature-cosine partials for one (batch, n-tile).

    pred_ref: (1, T, pr_rows, 128); feat_ref: (1, T, fr_rows, 128).
    frame_ref: (1, 1, 8, 128)      -- scalar-broadcast L1 partial sum.
    dot_ref:   (1, 1, T-1, 128)    -- per-pair <f_t, f_{t+1}> partials.
    norm_ref:  (1, 1, T, 128)      -- per-frame ||f_t||^2 partials (computed
                                      once per frame; shifted in the wrapper).
    """
    t = pred_ref.shape[1]
    prev_p = pred_ref[0, 0, :, :].astype(jnp.float32)
    prev_f = feat_ref[0, 0, :, :].astype(jnp.float32)
    norm_ref[0, 0, 0:1, :] = jnp.full(
        (1, 128), jnp.sum(prev_f * prev_f), jnp.float32)
    acc = jnp.zeros((), jnp.float32)
    for i in range(1, t):                       # pairwise walk, one upcast/frame
        cur_p = pred_ref[0, i, :, :].astype(jnp.float32)
        cur_f = feat_ref[0, i, :, :].astype(jnp.float32)
        acc = acc + jnp.sum(jnp.abs(cur_p - prev_p))
        dot_ref[0, 0, i - 1:i, :] = jnp.full(
            (1, 128), jnp.sum(prev_f * cur_f), jnp.float32)
        norm_ref[0, 0, i:i + 1, :] = jnp.full(
            (1, 128), jnp.sum(cur_f * cur_f), jnp.float32)
        prev_p = cur_p
        prev_f = cur_f
    frame_ref[0, 0, :, :] = jnp.full((8, 128), acc, jnp.float32)


# ----------------------------------------------------------------------------
# pallas_call wrappers
# ----------------------------------------------------------------------------
def _run_frame_only(pred_4d, block_rows, n_tiles, vmem_limit):
    b, t = pred_4d.shape[:2]
    out = pl.pallas_call(
        _frame_diff_kernel,
        out_shape=jax.ShapeDtypeStruct((b, n_tiles, 8, 128), jnp.float32),
        grid_spec=pltpu.PrefetchScalarGridSpec(
            num_scalar_prefetch=0,
            grid=(b, n_tiles),
            in_specs=[pl.BlockSpec((1, t, block_rows, 128),
                                   lambda bi, ni: (bi, 0, ni, 0))],
            out_specs=pl.BlockSpec((1, 1, 8, 128),
                                   lambda bi, ni: (bi, ni, 0, 0)),
        ),
        compiler_params=pltpu.CompilerParams(
            dimension_semantics=("parallel", "parallel"),
            vmem_limit_bytes=vmem_limit),
    )(pred_4d)
    return out[:, :, 0, 0]                      # (B, n_tiles)


def _run_fused(pred_4d, feat_4d, pr_rows, fr_rows, n_tiles, vmem_limit):
    b, t = pred_4d.shape[:2]
    frame_sd = jax.ShapeDtypeStruct((b, n_tiles, 8, 128), jnp.float32)
    dot_sd = jax.ShapeDtypeStruct((b, n_tiles, t - 1, 128), jnp.float32)
    norm_sd = jax.ShapeDtypeStruct((b, n_tiles, t, 128), jnp.float32)
    out_map = lambda bi, ni: (bi, ni, 0, 0)
    frame_o, dot_o, norm_o = pl.pallas_call(
        _fused_kernel,
        out_shape=(frame_sd, dot_sd, norm_sd),
        grid_spec=pltpu.PrefetchScalarGridSpec(
            num_scalar_prefetch=0,
            grid=(b, n_tiles),
            in_specs=[pl.BlockSpec((1, t, pr_rows, 128),
                                   lambda bi, ni: (bi, 0, ni, 0)),
                      pl.BlockSpec((1, t, fr_rows, 128),
                                   lambda bi, ni: (bi, 0, ni, 0))],
            out_specs=[pl.BlockSpec((1, 1, 8, 128), out_map),
                       pl.BlockSpec((1, 1, t - 1, 128), out_map),
                       pl.BlockSpec((1, 1, t, 128), out_map)],
        ),
        compiler_params=pltpu.CompilerParams(
            dimension_semantics=("parallel", "parallel"),
            vmem_limit_bytes=vmem_limit),
    )(pred_4d, feat_4d)
    return frame_o[:, :, 0, 0], dot_o[:, :, :, 0], norm_o[:, :, :, 0]


# ----------------------------------------------------------------------------
# Public wrapper (matches TemporalConsistencyLoss.forward)
# ----------------------------------------------------------------------------
def temporal_consistency_loss(predictions, features=None, alpha=0.1, beta=0.05):
    """predictions: (B, T, C, H, W); features: (B, T, F, H, W) or None."""
    b, t = predictions.shape[:2]
    assert t >= 2, "TemporalConsistencyLoss needs at least two frames"
    n = 1
    for d in predictions.shape[2:]:
        n *= d
    pred_btn = predictions.reshape(b, t, n)     # free reshape, native dtype

    num_inputs = 1 if features is None else 2
    per_buf, vmem_limit, min_steps = _generation_params(num_inputs)
    pr_rows, nt_pred, pr_rows_pad = _choose_tiling(
        n, t, pred_btn.dtype.itemsize, b, per_buf, min_steps)

    if features is None:
        pred_4d = _pad_to_rows(pred_btn, pr_rows_pad)
        frame_p = _run_frame_only(pred_4d, pr_rows, nt_pred, vmem_limit)
        frame_loss = jnp.sum(frame_p) / jnp.float32((t - 1) * b * n)
        return jnp.float32(alpha) * frame_loss

    bf, tf = features.shape[:2]
    assert bf == b and tf == t and tf >= 2, (
        "features must share batch and frame count with predictions")
    nf = 1
    for d in features.shape[2:]:
        nf *= d
    feat_btn = features.reshape(bf, tf, nf)     # matches .view(B, -1) order

    fr_rows, nt_feat, _ = _choose_tiling(
        nf, tf, feat_btn.dtype.itemsize, bf, per_buf, min_steps)

    # Fused kernel: both arrays share one grid -> unify on the larger tile
    # count (smaller blocks are always VMEM-safe) and re-derive rows per array.
    n_tiles = max(nt_pred, nt_feat)
    pr_rows = _rows_for_tiles(n, n_tiles)
    fr_rows = _rows_for_tiles(nf, n_tiles)
    pred_4d = _pad_to_rows(pred_btn, pr_rows * n_tiles)
    feat_4d = _pad_to_rows(feat_btn, fr_rows * n_tiles)

    frame_p, dot_p, norm_p = _run_fused(
        pred_4d, feat_4d, pr_rows, fr_rows, n_tiles, vmem_limit)

    frame_loss = jnp.sum(frame_p) / jnp.float32((t - 1) * b * n)

    # Combine per-n-tile partials, then finalize exactly like
    # F.cosine_similarity: cos = a.b / max(||a|| * ||b||, eps).
    dot = jnp.sum(dot_p, axis=1)                # (B, T-1)
    norm2 = jnp.sum(norm_p, axis=1)             # (B, T)
    denom = jnp.maximum(jnp.sqrt(norm2[:, :-1]) * jnp.sqrt(norm2[:, 1:]),
                        jnp.float32(1e-8))
    cos = dot / denom
    feat_loss = jnp.sum(1.0 - cos) / jnp.float32((t - 1) * b)

    return jnp.float32(alpha) * frame_loss + jnp.float32(beta) * feat_loss


# ----------------------------------------------------------------------------
# Pure-JAX reference mirroring the PyTorch forward exactly
# ----------------------------------------------------------------------------
def _reference_loss(predictions, features=None, alpha=0.1, beta=0.05):
    b, t = predictions.shape[:2]
    frame_loss = 0.0
    for i in range(t - 1):
        frame_loss += jnp.mean(
            jnp.abs(predictions[:, i].astype(jnp.float32) -
                    predictions[:, i + 1].astype(jnp.float32)))
    frame_loss = frame_loss / (t - 1)
    feat_loss = 0.0
    if features is not None:
        for i in range(t - 1):
            a = features[:, i].reshape(b, -1).astype(jnp.float32)
            c = features[:, i + 1].reshape(b, -1).astype(jnp.float32)
            denom = jnp.maximum(
                jnp.linalg.norm(a, axis=1) * jnp.linalg.norm(c, axis=1), 1e-8)
            cos = jnp.sum(a * c, axis=1) / denom
            feat_loss += jnp.mean(1.0 - cos)
        feat_loss = feat_loss / (t - 1)
    return alpha * frame_loss + beta * feat_loss


if __name__ == "__main__":
    key = jax.random.PRNGKey(0)
    k1, k2, k3, k4 = jax.random.split(key, 4)

    # Test 1: fused path, lane-aligned shapes (B, T, C, H, W) / (B, T, F, H, W)
    B, T, C, H, W, F = 2, 8, 4, 16, 16, 8
    predictions = jax.random.normal(k1, (B, T, C, H, W), dtype=jnp.float32)
    features = jax.random.normal(k2, (B, T, F, H, W), dtype=jnp.float32)
    loss = jax.block_until_ready(
        temporal_consistency_loss(predictions, features, alpha=0.1, beta=0.05))
    ref = jax.block_until_ready(
        _reference_loss(predictions, features, alpha=0.1, beta=0.05))
    assert jnp.allclose(loss, ref, rtol=1e-5, atol=1e-5), (loss, ref)

    # Test 2: non-128-multiple N (exercises zero-padding path) + fused kernel.
    B2, T2, C2, H2, W2, F2 = 1, 5, 3, 15, 15, 6
    pred2 = jax.random.normal(k3, (B2, T2, C2, H2, W2), dtype=jnp.float32)
    feat2 = jax.random.normal(k4, (B2, T2, F2, H2, W2), dtype=jnp.float32)
    loss2 = jax.block_until_ready(
        temporal_consistency_loss(pred2, feat2, alpha=0.1, beta=0.05))
    ref2 = jax.block_until_ready(
        _reference_loss(pred2, feat2, alpha=0.1, beta=0.05))
    assert jnp.allclose(loss2, ref2, rtol=1e-5, atol=1e-5), (loss2, ref2)

    # Test 3: predictions-only path (features=None).
    loss3 = jax.block_until_ready(
        temporal_consistency_loss(pred2, None, alpha=0.1, beta=0.05))
    ref3 = jax.block_until_ready(
        _reference_loss(pred2, None, alpha=0.1, beta=0.05))
    assert jnp.allclose(loss3, ref3, rtol=1e-5, atol=1e-5), (loss3, ref3)

    print("KERNEL_OK")
</pallas_src>

<mosaic_0001>
module attributes {stable_mosaic.version = 11 : i64} {
  func.func @_fused_kernel(%arg0: i32, %arg1: i32, %arg2: memref<1x8x8x128xf32, #tpu.memory_space<vmem>>, %arg3: memref<1x8x16x128xf32, #tpu.memory_space<vmem>>, %arg4: memref<1x1x8x128xf32, #tpu.memory_space<vmem>>, %arg5: memref<1x1x7x128xf32, #tpu.memory_space<vmem>>, %arg6: memref<1x1x8x128xf32, #tpu.memory_space<vmem>>) attributes {dimension_semantics = [#tpu.dimension_semantics<parallel>, #tpu.dimension_semantics<parallel>], iteration_bounds = array<i64: 2, 1>, scalar_prefetch = 0 : i64, scratch_operands = 0 : i64, tpu.core_type = #tpu.core_type<tc>, window_params = [{transform_indices = @transform_0, window_bounds = array<i64: 1, 8, 8, 128>}, {transform_indices = @transform_1, window_bounds = array<i64: 1, 8, 16, 128>}, {transform_indices = @transform_2, window_bounds = array<i64: 1, 1, 8, 128>}, {transform_indices = @transform_3, window_bounds = array<i64: 1, 1, 7, 128>}, {transform_indices = @transform_4, window_bounds = array<i64: 1, 1, 8, 128>}]} {
    %c0 = arith.constant 0 : index
    %c0_0 = arith.constant 0 : index
    %c0_1 = arith.constant 0 : index
    %c0_2 = arith.constant 0 : index
    %0 = vector.load %arg2[%c0, %c0_0, %c0_1, %c0_2] : memref<1x8x8x128xf32, #tpu.memory_space<vmem>>, vector<1x1x8x128xf32>
    %1 = vector.shape_cast %0 : vector<1x1x8x128xf32> to vector<8x128xf32>
    %c0_3 = arith.constant 0 : index
    %c0_4 = arith.constant 0 : index
    %c0_5 = arith.constant 0 : index
    %c0_6 = arith.constant 0 : index
    %2 = vector.load %arg3[%c0_3, %c0_4, %c0_5, %c0_6] : memref<1x8x16x128xf32, #tpu.memory_space<vmem>>, vector<1x1x16x128xf32>
    %3 = vector.shape_cast %2 : vector<1x1x16x128xf32> to vector<16x128xf32>
    %4 = arith.mulf %3, %3 : vector<16x128xf32>
    %5 = vector.shape_cast %4 : vector<16x128xf32> to vector<1x16x128xf32>
    %cst = arith.constant dense<0.000000e+00> : vector<1xf32>
    %6 = vector.multi_reduction <add>, %5, %cst [1, 2] : vector<1x16x128xf32> to vector<1xf32>
    %7 = vector.shape_cast %6 : vector<1xf32> to vector<1x1x1xf32>
    %8 = vector.extract %7[0, 0, 0] : f32 from vector<1x1x1xf32>
    %9 = vector.broadcast %8 : f32 to vector<1x128xf32>
    %c0_7 = arith.constant 0 : index
    %c0_8 = arith.constant 0 : index
    %c0_9 = arith.constant 0 : index
    %c0_10 = arith.constant 0 : index
    %10 = vector.load %arg6[%c0_7, %c0_8, %c0_9, %c0_10] : memref<1x1x8x128xf32, #tpu.memory_space<vmem>>, vector<1x1x1x128xf32>
    %11 = vector.shape_cast %10 : vector<1x1x1x128xf32> to vector<1x128xf32>
    %12 = vector.shape_cast %9 : vector<1x128xf32> to vector<1x1x1x128xf32>
    tpu.vector_store %arg6[%c0_7, %c0_8, %c0_9, %c0_10], %12 {strides = array<i32>} : memref<1x1x8x128xf32, #tpu.memory_space<vmem>>, vector<1x1x1x128xf32>,
    %c0_11 = arith.constant 0 : index
    %c1 = arith.constant 1 : index
    %c0_12 = arith.constant 0 : index
    %c0_13 = arith.constant 0 : index
    %13 = vector.load %arg2[%c0_11, %c1, %c0_12, %c0_13] : memref<1x8x8x128xf32, #tpu.memory_space<vmem>>, vector<1x1x8x128xf32>
    %14 = vector.shape_cast %13 : vector<1x1x8x128xf32> to vector<8x128xf32>
    %c0_14 = arith.constant 0 : index
    %c1_15 = arith.constant 1 : index
    %c0_16 = arith.constant 0 : index
    %c0_17 = arith.constant 0 : index
    %15 = vector.load %arg3[%c0_14, %c1_15, %c0_16, %c0_17] : memref<1x8x16x128xf32, #tpu.memory_space<vmem>>, vector<1x1x16x128xf32>
    %16 = vector.shape_cast %15 : vector<1x1x16x128xf32> to vector<16x128xf32>
    %17 = arith.subf %14, %1 : vector<8x128xf32>
    %18 = math.absf %17 : vector<8x128xf32>
    %19 = vector.shape_cast %18 : vector<8x128xf32> to vector<1x8x128xf32>
    %cst_18 = arith.constant dense<0.000000e+00> : vector<1xf32>
    %20 = vector.multi_reduction <add>, %19, %cst_18 [1, 2] : vector<1x8x128xf32> to vector<1xf32>
    %21 = vector.shape_cast %20 : vector<1xf32> to vector<1x1x1xf32>
    %22 = vector.extract %21[0, 0, 0] : f32 from vector<1x1x1xf32>
    %cst_19 = arith.constant 0.000000e+00 : f32
    %23 = arith.addf %cst_19, %22 : f32
    %24 = arith.mulf %3, %16 : vector<16x128xf32>
    %25 = vector.shape_cast %24 : vector<16x128xf32> to vector<1x16x128xf32>
    %cst_20 = arith.constant dense<0.000000e+00> : vector<1xf32>
    %26 = vector.multi_reduction <add>, %25, %cst_20 [1, 2] : vector<1x16x128xf32> to vector<1xf32>
    %27 = vector.shape_cast %26 : vector<1xf32> to vector<1x1x1xf32>
    %28 = vector.extract %27[0, 0, 0] : f32 from vector<1x1x1xf32>
    %29 = vector.broadcast %28 : f32 to vector<1x128xf32>
    %c0_21 = arith.constant 0 : index
    %c0_22 = arith.constant 0 : index
    %c0_23 = arith.constant 0 : index
    %c0_24 = arith.constant 0 : index
    %30 = vector.load %arg5[%c0_21, %c0_22, %c0_23, %c0_24] : memref<1x1x7x128xf32, #tpu.memory_space<vmem>>, vector<1x1x1x128xf32>
    %31 = vector.shape_cast %30 : vector<1x1x1x128xf32> to vector<1x128xf32>
    %32 = vector.shape_cast %29 : vector<1x128xf32> to vector<1x1x1x128xf32>
    tpu.vector_store %arg5[%c0_21, %c0_22, %c0_23, %c0_24], %32 {strides = array<i32>} : memref<1x1x7x128xf32, #tpu.memory_space<vmem>>, vector<1x1x1x128xf32>,
    %33 = arith.mulf %16, %16 : vector<16x128xf32>
    %34 = vector.shape_cast %33 : vector<16x128xf32> to vector<1x16x128xf32>
    %cst_25 = arith.constant dense<0.000000e+00> : vector<1xf32>
    %35 = vector.multi_reduction <add>, %34, %cst_25 [1, 2] : vector<1x16x128xf32> to vector<1xf32>
    %36 = vector.shape_cast %35 : vector<1xf32> to vector<1x1x1xf32>
    %37 = vector.extract %36[0, 0, 0] : f32 from vector<1x1x1xf32>
    %38 = vector.broadcast %37 : f32 to vector<1x128xf32>
    %c0_26 = arith.constant 0 : index
    %c0_27 = arith.constant 0 : index
    %c1_28 = arith.constant 1 : index
    %c0_29 = arith.constant 0 : index
    %39 = vector.load %arg6[%c0_26, %c0_27, %c1_28, %c0_29] : memref<1x1x8x128xf32, #tpu.memory_space<vmem>>, vector<1x1x1x128xf32>
    %40 = vector.shape_cast %39 : vector<1x1x1x128xf32> to vector<1x128xf32>
    %41 = vector.shape_cast %38 : vector<1x128xf32> to vector<1x1x1x128xf32>
    tpu.vector_store %arg6[%c0_26, %c0_27, %c1_28, %c0_29], %41 {strides = array<i32>} : memref<1x1x8x128xf32, #tpu.memory_space<vmem>>, vector<1x1x1x128xf32>,
    %c0_30 = arith.constant 0 : index
    %c2 = arith.constant 2 : index
    %c0_31 = arith.constant 0 : index
    %c0_32 = arith.constant 0 : index
    %42 = vector.load %arg2[%c0_30, %c2, %c0_31, %c0_32] : memref<1x8x8x128xf32, #tpu.memory_space<vmem>>, vector<1x1x8x128xf32>
    %43 = vector.shape_cast %42 : vector<1x1x8x128xf32> to vector<8x128xf32>
    %c0_33 = arith.constant 0 : index
    %c2_34 = arith.constant 2 : index
    %c0_35 = arith.constant 0 : index
    %c0_36 = arith.constant 0 : index
    %44 = vector.load %arg3[%c0_33, %c2_34, %c0_35, %c0_36] : memref<1x8x16x128xf32, #tpu.memory_space<vmem>>, vector<1x1x16x128xf32>
    %45 = vector.shape_cast %44 : vector<1x1x16x128xf32> to vector<16x128xf32>
    %46 = arith.subf %43, %14 : vector<8x128xf32>
    %47 = math.absf %46 : vector<8x128xf32>
    %48 = vector.shape_cast %47 : vector<8x128xf32> to vector<1x8x128xf32>
    %cst_37 = arith.constant dense<0.000000e+00> : vector<1xf32>
    %49 = vector.multi_reduction <add>, %48, %cst_37 [1, 2] : vector<1x8x128xf32> to vector<1xf32>
    %50 = vector.shape_cast %49 : vector<1xf32> to vector<1x1x1xf32>
    %51 = vector.extract %50[0, 0, 0] : f32 from vector<1x1x1xf32>
    %52 = arith.addf %23, %51 : f32
    %53 = arith.mulf %16, %45 : vector<16x128xf32>
    %54 = vector.shape_cast %53 : vector<16x128xf32> to vector<1x16x128xf32>
    %cst_38 = arith.constant dense<0.000000e+00> : vector<1xf32>
    %55 = vector.multi_reduction <add>, %54, %cst_38 [1, 2] : vector<1x16x128xf32> to vector<1xf32>
    %56 = vector.shape_cast %55 : vector<1xf32> to vector<1x1x1xf32>
    %57 = vector.extract %56[0, 0, 0] : f32 from vector<1x1x1xf32>
    %58 = vector.broadcast %57 : f32 to vector<1x128xf32>
    %c0_39 = arith.constant 0 : index
    %c0_40 = arith.constant 0 : index
    %c1_41 = arith.constant 1 : index
    %c0_42 = arith.constant 0 : index
    %59 = vector.load %arg5[%c0_39, %c0_40, %c1_41, %c0_42] : memref<1x1x7x128xf32, #tpu.memory_space<vmem>>, vector<1x1x1x128xf32>
    %60 = vector.shape_cast %59 : vector<1x1x1x128xf32> to vector<1x128xf32>
    %61 = vector.shape_cast %58 : vector<1x128xf32> to vector<1x1x1x128xf32>
    tpu.vector_store %arg5[%c0_39, %c0_40, %c1_41, %c0_42], %61 {strides = array<i32>} : memref<1x1x7x128xf32, #tpu.memory_space<vmem>>, vector<1x1x1x128xf32>,
    %62 = arith.mulf %45, %45 : vector<16x128xf32>
    %63 = vector.shape_cast %62 : vector<16x128xf32> to vector<1x16x128xf32>
    %cst_43 = arith.constant dense<0.000000e+00> : vector<1xf32>
    %64 = vector.multi_reduction <add>, %63, %cst_43 [1, 2] : vector<1x16x128xf32> to vector<1xf32>
    %65 = vector.shape_cast %64 : vector<1xf32> to vector<1x1x1xf32>
    %66 = vector.extract %65[0, 0, 0] : f32 from vector<1x1x1xf32>
    %67 = vector.broadcast %66 : f32 to vector<1x128xf32>
    %c0_44 = arith.constant 0 : index
    %c0_45 = arith.constant 0 : index
    %c2_46 = arith.constant 2 : index
    %c0_47 = arith.constant 0 : index
    %68 = vector.load %arg6[%c0_44, %c0_45, %c2_46, %c0_47] : memref<1x1x8x128xf32, #tpu.memory_space<vmem>>, vector<1x1x1x128xf32>
    %69 = vector.shape_cast %68 : vector<1x1x1x128xf32> to vector<1x128xf32>
    %70 = vector.shape_cast %67 : vector<1x128xf32> to vector<1x1x1x128xf32>
    tpu.vector_store %arg6[%c0_44, %c0_45, %c2_46, %c0_47], %70 {strides = array<i32>} : memref<1x1x8x128xf32, #tpu.memory_space<vmem>>, vector<1x1x1x128xf32>,
    %c0_48 = arith.constant 0 : index
    %c3 = arith.constant 3 : index
    %c0_49 = arith.constant 0 : index
    %c0_50 = arith.constant 0 : index
    %71 = vector.load %arg2[%c0_48, %c3, %c0_49, %c0_50] : memref<1x8x8x128xf32, #tpu.memory_space<vmem>>, vector<1x1x8x128xf32>
    %72 = vector.shape_cast %71 : vector<1x1x8x128xf32> to vector<8x128xf32>
    %c0_51 = arith.constant 0 : index
    %c3_52 = arith.constant 3 : index
    %c0_53 = arith.constant 0 : index
    %c0_54 = arith.constant 0 : index
    %73 = vector.load %arg3[%c0_51, %c3_52, %c0_53, %c0_54] : memref<1x8x16x128xf32, #tpu.memory_space<vmem>>, vector<1x1x16x128xf32>
    %74 = vector.shape_cast %73 : vector<1x1x16x128xf32> to vector<16x128xf32>
    %75 = arith.subf %72, %43 : vector<8x128xf32>
    %76 = math.absf %75 : vector<8x128xf32>
    %77 = vector.shape_cast %76 : vector<8x128xf32> to vector<1x8x128xf32>
    %cst_55 = arith.constant dense<0.000000e+00> : vector<1xf32>
    %78 = vector.multi_reduction <add>, %77, %cst_55 [1, 2] : vector<1x8x128xf32> to vector<1xf32>
    %79 = vector.shape_cast %78 : vector<1xf32> to vector<1x1x1xf32>
    %80 = vector.extract %79[0, 0, 0] : f32 from vector<1x1x1xf32>
    %81 = arith.addf %52, %80 : f32
    %82 = arith.mulf %45, %74 : vector<16x128xf32>
    %83 = vector.shape_cast %82 : vector<16x128xf32> to vector<1x16x128xf32>
    %cst_56 = arith.constant dense<0.000000e+00> : vector<1xf32>
    %84 = vector.multi_reduction <add>, %83, %cst_56 [1, 2] : vector<1x16x128xf32> to vector<1xf32>
    %85 = vector.shape_cast %84 : vector<1xf32> to vector<1x1x1xf32>
    %86 = vector.extract %85[0, 0, 0] : f32 from vector<1x1x1xf32>
    %87 = vector.broadcast %86 : f32 to vector<1x128xf32>
    %c0_57 = arith.constant 0 : index
    %c0_58 = arith.constant 0 : index
    %c2_59 = arith.constant 2 : index
    %c0_60 = arith.constant 0 : index
    %88 = vector.load %arg5[%c0_57, %c0_58, %c2_59, %c0_60] : memref<1x1x7x128xf32, #tpu.memory_space<vmem>>, vector<1x1x1x128xf32>
    %89 = vector.shape_cast %88 : vector<1x1x1x128xf32> to vector<1x128xf32>
    %90 = vector.shape_cast %87 : vector<1x128xf32> to vector<1x1x1x128xf32>
    tpu.vector_store %arg5[%c0_57, %c0_58, %c2_59, %c0_60], %90 {strides = array<i32>} : memref<1x1x7x128xf32, #tpu.memory_space<vmem>>, vector<1x1x1x128xf32>,
    %91 = arith.mulf %74, %74 : vector<16x128xf32>
    %92 = vector.shape_cast %91 : vector<16x128xf32> to vector<1x16x128xf32>
    %cst_61 = arith.constant dense<0.000000e+00> : vector<1xf32>
    %93 = vector.multi_reduction <add>, %92, %cst_61 [1, 2] : vector<1x16x128xf32> to vector<1xf32>
    %94 = vector.shape_cast %93 : vector<1xf32> to vector<1x1x1xf32>
    %95 = vector.extract %94[0, 0, 0] : f32 from vector<1x1x1xf32>
    %96 = vector.broadcast %95 : f32 to vector<1x128xf32>
    %c0_62 = arith.constant 0 : index
    %c0_63 = arith.constant 0 : index
    %c3_64 = arith.constant 3 : index
    %c0_65 = arith.constant 0 : index
    %97 = vector.load %arg6[%c0_62, %c0_63, %c3_64, %c0_65] : memref<1x1x8x128xf32, #tpu.memory_space<vmem>>, vector<1x1x1x128xf32>
    %98 = vector.shape_cast %97 : vector<1x1x1x128xf32> to vector<1x128xf32>
    %99 = vector.shape_cast %96 : vector<1x128xf32> to vector<1x1x1x128xf32>
    tpu.vector_store %arg6[%c0_62, %c0_63, %c3_64, %c0_65], %99 {strides = array<i32>} : memref<1x1x8x128xf32, #tpu.memory_space<vmem>>, vector<1x1x1x128xf32>,
    %c0_66 = arith.constant 0 : index
    %c4 = arith.constant 4 : index
    %c0_67 = arith.constant 0 : index
    %c0_68 = arith.constant 0 : index
    %100 = vector.load %arg2[%c0_66, %c4, %c0_67, %c0_68] : memref<1x8x8x128xf32, #tpu.memory_space<vmem>>, vector<1x1x8x128xf32>
    %101 = vector.shape_cast %100 : vector<1x1x8x128xf32> to vector<8x128xf32>
    %c0_69 = arith.constant 0 : index
    %c4_70 = arith.constant 4 : index
    %c0_71 = arith.constant 0 : index
    %c0_72 = arith.constant 0 : index
    %102 = vector.load %arg3[%c0_69, %c4_70, %c0_71, %c0_72] : memref<1x8x16x128xf32, #tpu.memory_space<vmem>>, vector<1x1x16x128xf32>
    %103 = vector.shape_cast %102 : vector<1x1x16x128xf32> to vector<16x128xf32>
    %104 = arith.subf %101, %72 : vector<8x128xf32>
    %105 = math.absf %104 : vector<8x128xf32>
    %106 = vector.shape_cast %105 : vector<8x128xf32> to vector<1x8x128xf32>
    %cst_73 = arith.constant dense<0.000000e+00> : vector<1xf32>
    %107 = vector.multi_reduction <add>, %106, %cst_73 [1, 2] : vector<1x8x128xf32> to vector<1xf32>
    %108 = vector.shape_cast %107 : vector<1xf32> to vector<1x1x1xf32>
    %109 = vector.extract %108[0, 0, 0] : f32 from vector<1x1x1xf32>
    %110 = arith.addf %81, %109 : f32
    %111 = arith.mulf %74, %103 : vector<16x128xf32>
    %112 = vector.shape_cast %111 : vector<16x128xf32> to vector<1x16x128xf32>
    %cst_74 = arith.constant dense<0.000000e+00> : vector<1xf32>
    %113 = vector.multi_reduction <add>, %112, %cst_74 [1, 2] : vector<1x16x128xf32> to vector<1xf32>
    %114 = vector.shape_cast %113 : vector<1xf32> to vector<1x1x1xf32>
    %115 = vector.extract %114[0, 0, 0] : f32 from vector<1x1x1xf32>
    %116 = vector.broadcast %115 : f32 to vector<1x128xf32>
    %c0_75 = arith.constant 0 : index
    %c0_76 = arith.constant 0 : index
    %c3_77 = arith.constant 3 : index
    %c0_78 = arith.constant 0 : index
    %117 = vector.load %arg5[%c0_75, %c0_76, %c3_77, %c0_78] : memref<1x1x7x128xf32, #tpu.memory_space<vmem>>, vector<1x1x1x128xf32>
    %118 = vector.shape_cast %117 : vector<1x1x1x128xf32> to vector<1x128xf32>
    %119 = vector.shape_cast %116 : vector<1x128xf32> to vector<1x1x1x128xf32>
    tpu.vector_store %arg5[%c0_75, %c0_76, %c3_77, %c0_78], %119 {strides = array<i32>} : memref<1x1x7x128xf32, #tpu.memory_space<vmem>>, vector<1x1x1x128xf32>,
    %120 = arith.mulf %103, %103 : vector<16x128xf32>
    %121 = vector.shape_cast %120 : vector<16x128xf32> to vector<1x16x128xf32>
    %cst_79 = arith.constant dense<0.000000e+00> : vector<1xf32>
    %122 = vector.multi_reduction <add>, %121, %cst_79 [1, 2] : vector<1x16x128xf32> to vector<1xf32>
    %123 = vector.shape_cast %122 : vector<1xf32> to vector<1x1x1xf32>
    %124 = vector.extract %123[0, 0, 0] : f32 from vector<1x1x1xf32>
    %125 = vector.broadcast %124 : f32 to vector<1x128xf32>
    %c0_80 = arith.constant 0 : index
    %c0_81 = arith.constant 0 : index
    %c4_82 = arith.constant 4 : index
    %c0_83 = arith.constant 0 : index
    %126 = vector.load %arg6[%c0_80, %c0_81, %c4_82, %c0_83] : memref<1x1x8x128xf32, #tpu.memory_space<vmem>>, vector<1x1x1x128xf32>
    %127 = vector.shape_cast %126 : vector<1x1x1x128xf32> to vector<1x128xf32>
    %128 = vector.shape_cast %125 : vector<1x128xf32> to vector<1x1x1x128xf32>
    tpu.vector_store %arg6[%c0_80, %c0_81, %c4_82, %c0_83], %128 {strides = array<i32>} : memref<1x1x8x128xf32, #tpu.memory_space<vmem>>, vector<1x1x1x128xf32>,
    %c0_84 = arith.constant 0 : index
    %c5 = arith.constant 5 : index
    %c0_85 = arith.constant 0 : index
    %c0_86 = arith.constant 0 : index
    %129 = vector.load %arg2[%c0_84, %c5, %c0_85, %c0_86] : memref<1x8x8x128xf32, #tpu.memory_space<vmem>>, vector<1x1x8x128xf32>
    %130 = vector.shape_cast %129 : vector<1x1x8x128xf32> to vector<8x128xf32>
    %c0_87 = arith.constant 0 : index
    %c5_88 = arith.constant 5 : index
    %c0_89 = arith.constant 0 : index
    %c0_90 = arith.constant 0 : index
    %131 = vector.load %arg3[%c0_87, %c5_88, %c0_89, %c0_90] : memref<1x8x16x128xf32, #tpu.memory_space<vmem>>, vector<1x1x16x128xf32>
    %132 = vector.shape_cast %131 : vector<1x1x16x128xf32> to vector<16x128xf32>
    %133 = arith.subf %130, %101 : vector<8x128xf32>
    %134 = math.absf %133 : vector<8x128xf32>
    %135 = vector.shape_cast %134 : vector<8x128xf32> to vector<1x8x128xf32>
    %cst_91 = arith.constant dense<0.000000e+00> : vector<1xf32>
    %136 = vector.multi_reduction <add>, %135, %cst_91 [1, 2] : vector<1x8x128xf32> to vector<1xf32>
    %137 = vector.shape_cast %136 : vector<1xf32> to vector<1x1x1xf32>
    %138 = vector.extract %137[0, 0, 0] : f32 from vector<1x1x1xf32>
    %139 = arith.addf %110, %138 : f32
    %140 = arith.mulf %103, %132 : vector<16x128xf32>
    %141 = vector.shape_cast %140 : vector<16x128xf32> to vector<1x16x128xf32>
    %cst_92 = arith.constant dense<0.000000e+00> : vector<1xf32>
    %142 = vector.multi_reduction <add>, %141, %cst_92 [1, 2] : vector<1x16x128xf32> to vector<1xf32>
    %143 = vector.shape_cast %142 : vector<1xf32> to vector<1x1x1xf32>
    %144 = vector.extract %143[0, 0, 0] : f32 from vector<1x1x1xf32>
    %145 = vector.broadcast %144 : f32 to vector<1x128xf32>
    %c0_93 = arith.constant 0 : index
    %c0_94 = arith.constant 0 : index
    %c4_95 = arith.constant 4 : index
    %c0_96 = arith.constant 0 : index
    %146 = vector.load %arg5[%c0_93, %c0_94, %c4_95, %c0_96] : memref<1x1x7x128xf32, #tpu.memory_space<vmem>>, vector<1x1x1x128xf32>
    %147 = vector.shape_cast %146 : vector<1x1x1x128xf32> to vector<1x128xf32>
    %148 = vector.shape_cast %145 : vector<1x128xf32> to vector<1x1x1x128xf32>
    tpu.vector_store %arg5[%c0_93, %c0_94, %c4_95, %c0_96], %148 {strides = array<i32>} : memref<1x1x7x128xf32, #tpu.memory_space<vmem>>, vector<1x1x1x128xf32>,
    %149 = arith.mulf %132, %132 : vector<16x128xf32>
    %150 = vector.shape_cast %149 : vector<16x128xf32> to vector<1x16x128xf32>
    %cst_97 = arith.constant dense<0.000000e+00> : vector<1xf32>
    %151 = vector.multi_reduction <add>, %150, %cst_97 [1, 2] : vector<1x16x128xf32> to vector<1xf32>
    %152 = vector.shape_cast %151 : vector<1xf32> to vector<1x1x1xf32>
    %153 = vector.extract %152[0, 0, 0] : f32 from vector<1x1x1xf32>
    %154 = vector.broadcast %153 : f32 to vector<1x128xf32>
    %c0_98 = arith.constant 0 : index
    %c0_99 = arith.constant 0 : index
    %c5_100 = arith.constant 5 : index
    %c0_101 = arith.constant 0 : index
    %155 = vector.load %arg6[%c0_98, %c0_99, %c5_100, %c0_101] : memref<1x1x8x128xf32, #tpu.memory_space<vmem>>, vector<1x1x1x128xf32>
    %156 = vector.shape_cast %155 : vector<1x1x1x128xf32> to vector<1x128xf32>
    %157 = vector.shape_cast %154 : vector<1x128xf32> to vector<1x1x1x128xf32>
    tpu.vector_store %arg6[%c0_98, %c0_99, %c5_100, %c0_101], %157 {strides = array<i32>} : memref<1x1x8x128xf32, #tpu.memory_space<vmem>>, vector<1x1x1x128xf32>,
    %c0_102 = arith.constant 0 : index
    %c6 = arith.constant 6 : index
    %c0_103 = arith.constant 0 : index
    %c0_104 = arith.constant 0 : index
    %158 = vector.load %arg2[%c0_102, %c6, %c0_103, %c0_104] : memref<1x8x8x128xf32, #tpu.memory_space<vmem>>, vector<1x1x8x128xf32>
    %159 = vector.shape_cast %158 : vector<1x1x8x128xf32> to vector<8x128xf32>
    %c0_105 = arith.constant 0 : index
    %c6_106 = arith.constant 6 : index
    %c0_107 = arith.constant 0 : index
    %c0_108 = arith.constant 0 : index
    %160 = vector.load %arg3[%c0_105, %c6_106, %c0_107, %c0_108] : memref<1x8x16x128xf32, #tpu.memory_space<vmem>>, vector<1x1x16x128xf32>
    %161 = vector.shape_cast %160 : vector<1x1x16x128xf32> to vector<16x128xf32>
    %162 = arith.subf %159, %130 : vector<8x128xf32>
    %163 = math.absf %162 : vector<8x128xf32>
    %164 = vector.shape_cast %163 : vector<8x128xf32> to vector<1x8x128xf32>
    %cst_109 = arith.constant dense<0.000000e+00> : vector<1xf32>
    %165 = vector.multi_reduction <add>, %164, %cst_109 [1, 2] : vector<1x8x128xf32> to vector<1xf32>
    %166 = vector.shape_cast %165 : vector<1xf32> to vector<1x1x1xf32>
    %167 = vector.extract %166[0, 0, 0] : f32 from vector<1x1x1xf32>
    %168 = arith.addf %139, %167 : f32
    %169 = arith.mulf %132, %161 : vector<16x128xf32>
    %170 = vector.shape_cast %169 : vector<16x128xf32> to vector<1x16x128xf32>
    %cst_110 = arith.constant dense<0.000000e+00> : vector<1xf32>
    %171 = vector.multi_reduction <add>, %170, %cst_110 [1, 2] : vector<1x16x128xf32> to vector<1xf32>
    %172 = vector.shape_cast %171 : vector<1xf32> to vector<1x1x1xf32>
    %173 = vector.extract %172[0, 0, 0] : f32 from vector<1x1x1xf32>
    %174 = vector.broadcast %173 : f32 to vector<1x128xf32>
    %c0_111 = arith.constant 0 : index
    %c0_112 = arith.constant 0 : index
    %c5_113 = arith.constant 5 : index
    %c0_114 = arith.constant 0 : index
    %175 = vector.load %arg5[%c0_111, %c0_112, %c5_113, %c0_114] : memref<1x1x7x128xf32, #tpu.memory_space<vmem>>, vector<1x1x1x128xf32>
    %176 = vector.shape_cast %175 : vector<1x1x1x128xf32> to vector<1x128xf32>
    %177 = vector.shape_cast %174 : vector<1x128xf32> to vector<1x1x1x128xf32>
    tpu.vector_store %arg5[%c0_111, %c0_112, %c5_113, %c0_114], %177 {strides = array<i32>} : memref<1x1x7x128xf32, #tpu.memory_space<vmem>>, vector<1x1x1x128xf32>,
    %178 = arith.mulf %161, %161 : vector<16x128xf32>
    %179 = vector.shape_cast %178 : vector<16x128xf32> to vector<1x16x128xf32>
    %cst_115 = arith.constant dense<0.000000e+00> : vector<1xf32>
    %180 = vector.multi_reduction <add>, %179, %cst_115 [1, 2] : vector<1x16x128xf32> to vector<1xf32>
    %181 = vector.shape_cast %180 : vector<1xf32> to vector<1x1x1xf32>
    %182 = vector.extract %181[0, 0, 0] : f32 from vector<1x1x1xf32>
    %183 = vector.broadcast %182 : f32 to vector<1x128xf32>
    %c0_116 = arith.constant 0 : index
    %c0_117 = arith.constant 0 : index
    %c6_118 = arith.constant 6 : index
    %c0_119 = arith.constant 0 : index
    %184 = vector.load %arg6[%c0_116, %c0_117, %c6_118, %c0_119] : memref<1x1x8x128xf32, #tpu.memory_space<vmem>>, vector<1x1x1x128xf32>
    %185 = vector.shape_cast %184 : vector<1x1x1x128xf32> to vector<1x128xf32>
    %186 = vector.shape_cast %183 : vector<1x128xf32> to vector<1x1x1x128xf32>
    tpu.vector_store %arg6[%c0_116, %c0_117, %c6_118, %c0_119], %186 {strides = array<i32>} : memref<1x1x8x128xf32, #tpu.memory_space<vmem>>, vector<1x1x1x128xf32>,
    %c0_120 = arith.constant 0 : index
    %c7 = arith.constant 7 : index
    %c0_121 = arith.constant 0 : index
    %c0_122 = arith.constant 0 : index
    %187 = vector.load %arg2[%c0_120, %c7, %c0_121, %c0_122] : memref<1x8x8x128xf32, #tpu.memory_space<vmem>>, vector<1x1x8x128xf32>
    %188 = vector.shape_cast %187 : vector<1x1x8x128xf32> to vector<8x128xf32>
    %c0_123 = arith.constant 0 : index
    %c7_124 = arith.constant 7 : index
    %c0_125 = arith.constant 0 : index
    %c0_126 = arith.constant 0 : index
    %189 = vector.load %arg3[%c0_123, %c7_124, %c0_125, %c0_126] : memref<1x8x16x128xf32, #tpu.memory_space<vmem>>, vector<1x1x16x128xf32>
    %190 = vector.shape_cast %189 : vector<1x1x16x128xf32> to vector<16x128xf32>
    %191 = arith.subf %188, %159 : vector<8x128xf32>
    %192 = math.absf %191 : vector<8x128xf32>
    %193 = vector.shape_cast %192 : vector<8x128xf32> to vector<1x8x128xf32>
    %cst_127 = arith.constant dense<0.000000e+00> : vector<1xf32>
    %194 = vector.multi_reduction <add>, %193, %cst_127 [1, 2] : vector<1x8x128xf32> to vector<1xf32>
    %195 = vector.shape_cast %194 : vector<1xf32> to vector<1x1x1xf32>
    %196 = vector.extract %195[0, 0, 0] : f32 from vector<1x1x1xf32>
    %197 = arith.addf %168, %196 : f32
    %198 = arith.mulf %161, %190 : vector<16x128xf32>
    %199 = vector.shape_cast %198 : vector<16x128xf32> to vector<1x16x128xf32>
    %cst_128 = arith.constant dense<0.000000e+00> : vector<1xf32>
    %200 = vector.multi_reduction <add>, %199, %cst_128 [1, 2] : vector<1x16x128xf32> to vector<1xf32>
    %201 = vector.shape_cast %200 : vector<1xf32> to vector<1x1x1xf32>
    %202 = vector.extract %201[0, 0, 0] : f32 from vector<1x1x1xf32>
    %203 = vector.broadcast %202 : f32 to vector<1x128xf32>
    %c0_129 = arith.constant 0 : index
    %c0_130 = arith.constant 0 : index
    %c6_131 = arith.constant 6 : index
    %c0_132 = arith.constant 0 : index
    %204 = vector.load %arg5[%c0_129, %c0_130, %c6_131, %c0_132] : memref<1x1x7x128xf32, #tpu.memory_space<vmem>>, vector<1x1x1x128xf32>
    %205 = vector.shape_cast %204 : vector<1x1x1x128xf32> to vector<1x128xf32>
    %206 = vector.shape_cast %203 : vector<1x128xf32> to vector<1x1x1x128xf32>
    tpu.vector_store %arg5[%c0_129, %c0_130, %c6_131, %c0_132], %206 {strides = array<i32>} : memref<1x1x7x128xf32, #tpu.memory_space<vmem>>, vector<1x1x1x128xf32>,
    %207 = arith.mulf %190, %190 : vector<16x128xf32>
    %208 = vector.shape_cast %207 : vector<16x128xf32> to vector<1x16x128xf32>
    %cst_133 = arith.constant dense<0.000000e+00> : vector<1xf32>
    %209 = vector.multi_reduction <add>, %208, %cst_133 [1, 2] : vector<1x16x128xf32> to vector<1xf32>
    %210 = vector.shape_cast %209 : vector<1xf32> to vector<1x1x1xf32>
    %211 = vector.extract %210[0, 0, 0] : f32 from vector<1x1x1xf32>
    %212 = vector.broadcast %211 : f32 to vector<1x128xf32>
    %c0_134 = arith.constant 0 : index
    %c0_135 = arith.constant 0 : index
    %c7_136 = arith.constant 7 : index
    %c0_137 = arith.constant 0 : index
    %213 = vector.load %arg6[%c0_134, %c0_135, %c7_136, %c0_137] : memref<1x1x8x128xf32, #tpu.memory_space<vmem>>, vector<1x1x1x128xf32>
    %214 = vector.shape_cast %213 : vector<1x1x1x128xf32> to vector<1x128xf32>
    %215 = vector.shape_cast %212 : vector<1x128xf32> to vector<1x1x1x128xf32>
    tpu.vector_store %arg6[%c0_134, %c0_135, %c7_136, %c0_137], %215 {strides = array<i32>} : memref<1x1x8x128xf32, #tpu.memory_space<vmem>>, vector<1x1x1x128xf32>,
    %216 = vector.broadcast %197 : f32 to vector<8x128xf32>
    %c0_138 = arith.constant 0 : index
    %c0_139 = arith.constant 0 : index
    %c0_140 = arith.constant 0 : index
    %c0_141 = arith.constant 0 : index
    %217 = vector.load %arg4[%c0_138, %c0_139, %c0_140, %c0_141] : memref<1x1x8x128xf32, #tpu.memory_space<vmem>>, vector<1x1x8x128xf32>
    %218 = vector.shape_cast %217 : vector<1x1x8x128xf32> to vector<8x128xf32>
    %219 = vector.shape_cast %216 : vector<8x128xf32> to vector<1x1x8x128xf32>
    tpu.vector_store %arg4[%c0_138, %c0_139, %c0_140, %c0_141], %219 {strides = array<i32>} : memref<1x1x8x128xf32, #tpu.memory_space<vmem>>, vector<1x1x8x128xf32>,
    return
  }
  func.func @transform_0(%arg0: i32, %arg1: i32) -> (i32, i32, i32, i32) {
    %c0_i32 = arith.constant 0 : i32
    %c0_i32_0 = arith.constant 0 : i32
    %c0_i32_1 = arith.constant 0 : i32
    return %arg0, %c0_i32, %arg1, %c0_i32_0 : i32, i32, i32, i32
  }
  func.func @transform_1(%arg0: i32, %arg1: i32) -> (i32, i32, i32, i32) {
    %c0_i32 = arith.constant 0 : i32
    %c0_i32_0 = arith.constant 0 : i32
    %c0_i32_1 = arith.constant 0 : i32
    return %arg0, %c0_i32, %arg1, %c0_i32_0 : i32, i32, i32, i32
  }
  func.func @transform_2(%arg0: i32, %arg1: i32) -> (i32, i32, i32, i32) {
    %c0_i32 = arith.constant 0 : i32
    %c0_i32_0 = arith.constant 0 : i32
    %c0_i32_1 = arith.constant 0 : i32
    return %arg0, %arg1, %c0_i32, %c0_i32_0 : i32, i32, i32, i32
  }
  func.func @transform_3(%arg0: i32, %arg1: i32) -> (i32, i32, i32, i32) {
    %c0_i32 = arith.constant 0 : i32
    %c0_i32_0 = arith.constant 0 : i32
    %c0_i32_1 = arith.constant 0 : i32
    return %arg0, %arg1, %c0_i32, %c0_i32_0 : i32, i32, i32, i32
  }
  func.func @transform_4(%arg0: i32, %arg1: i32) -> (i32, i32, i32, i32) {
    %c0_i32 = arith.constant 0 : i32
    %c0_i32_0 = arith.constant 0 : i32
    %c0_i32_1 = arith.constant 0 : i32
    return %arg0, %arg1, %c0_i32, %c0_i32_0 : i32, i32, i32, i32
  }
}

</mosaic_0001>

<llo_original>
// kernel: tpu_custom_call.1
$region0: #{tpu_custom_call.1}
  #allocation0 [shape = 'u32[]', space=smem, size = 0x4, offset = 0x4, fixed_abs, tag = 'smem constant byte address 0x4 - core index']
  #allocation1 [shape = 'u32[72,128]{1,0:T(1,128)}', space=vmem, size = 0x9000, scoped, tag = 'internal scratch']
  %s0 = inlined_call_operand.hbm [shape: f32[2,8,8,128], index: 0, kind: input, shape index: {}]
  %s1 = inlined_call_operand.hbm [shape: f32[2,8,16,128], index: 1, kind: input, shape index: {}]
  %s2 = inlined_call_operand.hbm [shape: f32[2,1,8,128], index: 2, kind: output, shape index: {0}]
  %s3 = inlined_call_operand.vmem [shape: f32[2,1,7,128], index: 3, kind: output, shape index: {1}]
  %s4 = inlined_call_operand.hbm [shape: f32[2,1,8,128], index: 4, kind: output, shape index: {2}]
  %5 = xla_tuple %s2, %s3, %s4
  %s6 = sld [smem:[#allocation0]]
  $region65: #{tpu_custom_call.1} parent=0
    _
  %s8 = ssub.s32 1, %s6
  %s9 = scalar_select 0, %s8, %s6
  $region1: #{tpu_custom_call.1} parent=0
    #allocation2 [shape = 'u8[65536]{0}', space=vmem, size = 0x10000, scoped, tag = 'input window, operand 0']
    #allocation3 [shape = 's32[2]{0}', space=sflag, size = 0x8, scoped, tag = 'scoped memory for tpu_custom_call.1']
    #allocation4 [shape = 's32[2]{0}', space=sflag, size = 0x8, scoped, tag = 'scoped memory for tpu_custom_call.1']
    #allocation5 [shape = 'u8[131072]{0}', space=vmem, size = 0x20000, scoped, tag = 'input window, operand 1']
    #allocation6 [shape = 's32[2]{0}', space=sflag, size = 0x8, scoped, tag = 'scoped memory for tpu_custom_call.1']
    #allocation7 [shape = 'u8[8192]{0}', space=vmem, size = 0x2000, scoped, tag = 'output window, operand 0']
    #allocation8 [shape = 'u8[8192]{0}', space=vmem, size = 0x2000, scoped, tag = 'output window, operand 2']
    #allocation9 [shape = 's32[2]{0}', space=sflag, size = 0x8, scoped, tag = 'scoped memory for tpu_custom_call.1']
    %10 = vsyncpa [#allocation3], 0
    %s11 = scalar_lea.sflag [#allocation3], 1
    %12 = vsyncpa %s11, 0
    %13 = vsyncpa [#allocation6], 0
    %s14 = scalar_lea.sflag [#allocation6], 1
    %15 = vsyncpa %s14, 0
    %16 = vsyncpa [#allocation4], 0
    %s17 = scalar_lea.sflag [#allocation4], 1
    %18 = vsyncpa %s17, 0
    %19 = vsyncpa [#allocation9], 0
    %s20 = scalar_lea.sflag [#allocation9], 1
    %21 = vsyncpa %s20, 0
    loop: start=0, step=1, limit=4
    $region2: #{tpu_custom_call.1} parent=1 // loop_pre_header
      _
    $region3: #{tpu_custom_call.1} parent=1 // loop_header
      %s23 = sphi 0, %s27
      %p24 = scmp.ge.s32.totalorder %s23, 4
      %s30 = sphi 0, %s42
      %s31 = sphi 0, %s38
      %s32 = sphi 0, %s30
      %s33 = sphi 0, %s31
      %s34 = sphi 0, %s32
      %s35 = sphi 0, %s33
      %s47 = sphi 0, %s49
      %s50 = sphi 0, %s47
      %s51 = sphi 0, %s50
      %s67 = sphi 0, %s51
      %s75 = sphi 0, %s77
      %s78 = sphi 0, %s75
      %s79 = sphi 0, %s78
      %s95 = sphi 0, %s79
      %s103 = sphi 0, %s105
      %s106 = sphi 0, %s103
      %s107 = sphi 0, %s106
      %s123 = sphi 0, %s107
      %s131 = sphi 0, %s133
      %s134 = sphi 0, %s131
      %s135 = sphi 0, %s134
      %s151 = sphi 0, %s135
      %s159 = sphi 0, %s161
      %s162 = sphi 0, %s159
      %s163 = sphi 0, %s162
      %s179 = sphi 0, %s163
    $region4: #{tpu_custom_call.1} parent=1 // loop_header_branch
      %26 = sbr.rel (%p24) target = $region8
    $region5: #{tpu_custom_call.1} parent=1 // loop_body
      %s28 = ssub.s32 %s23, 1
      %s29 = ssub.s32 %s23, 2
      %s36 = sadd.s32 1, %s31
      %p37 = scmp.ge.s32.totalorder %s36, 1
      %s38 = scalar_select %p37, 0, %s36
      %s39 = sadd.s32 1, %s30
      %s40 = scalar_select %p37, %s39, %s30
      %p41 = scmp.ge.s32.totalorder %s40, 2
      %s42 = scalar_select %p41, 0, %s40
      %s43 = ssub.s32 %s30, %s42
      %s44 = ssub.s32 %s31, %s38
      %s45 = sor.u32 %s43, %s44
      %p46 = scmp.eq.s32.totalorder %s45, 0
      %s48 = sadd.s32 %s47, 1
      %s49 = scalar_select %p46, %s47, %s48
      %p52 = pneg %p46
      %p53 = scmp.eq.s32.totalorder %s23, 1
      %p54 = por %p52, %p53
      %p55 = scmp.ne.s32.totalorder %s47, %s50
      %p56 = scmp.eq.s32.totalorder %s23, 0
      %p57 = por %p55, %p56
      %p58 = scmp.ne.s32.totalorder %s47, %s50
      %p59 = scmp.eq.s32.totalorder %s28, 1
      %p60 = por %p58, %p59
      %p61 = scmp.ne.s32.totalorder %s50, %s51
      %p62 = scmp.eq.s32.totalorder %s28, 0
      %p63 = por %p61, %p62
      %p64 = scmp.ne.s32.totalorder %s50, %s51
      %p65 = scmp.eq.s32.totalorder %s29, 1
      %p66 = por %p64, %p65
      %p68 = scmp.ne.s32.totalorder %s51, %s67
      %p69 = scmp.eq.s32.totalorder %s29, 0
      %p70 = por %p68, %p69
      %s71 = ssub.s32 %s30, %s42
      %s72 = ssub.s32 %s31, %s38
      %s73 = sor.u32 %s71, %s72
      %p74 = scmp.eq.s32.totalorder %s73, 0
      %s76 = sadd.s32 %s75, 1
      %s77 = scalar_select %p74, %s75, %s76
      %p80 = pneg %p74
      %p81 = scmp.eq.s32.totalorder %s23, 1
      %p82 = por %p80, %p81
      %p83 = scmp.ne.s32.totalorder %s75, %s78
      %p84 = scmp.eq.s32.totalorder %s23, 0
      %p85 = por %p83, %p84
      %p86 = scmp.ne.s32.totalorder %s75, %s78
      %p87 = scmp.eq.s32.totalorder %s28, 1
      %p88 = por %p86, %p87
      %p89 = scmp.ne.s32.totalorder %s78, %s79
      %p90 = scmp.eq.s32.totalorder %s28, 0
      %p91 = por %p89, %p90
      %p92 = scmp.ne.s32.totalorder %s78, %s79
      %p93 = scmp.eq.s32.totalorder %s29, 1
      %p94 = por %p92, %p93
      %p96 = scmp.ne.s32.totalorder %s79, %s95
      %p97 = scmp.eq.s32.totalorder %s29, 0
      %p98 = por %p96, %p97
      %s99 = ssub.s32 %s30, %s42
      %s100 = ssub.s32 %s31, %s38
      %s101 = sor.u32 %s99, %s100
      %p102 = scmp.eq.s32.totalorder %s101, 0
      %s104 = sadd.s32 %s103, 1
      %s105 = scalar_select %p102, %s103, %s104
      %p108 = pneg %p102
      %p109 = scmp.eq.s32.totalorder %s23, 1
      %p110 = por %p108, %p109
      %p111 = scmp.ne.s32.totalorder %s103, %s106
      %p112 = scmp.eq.s32.totalorder %s23, 0
      %p113 = por %p111, %p112
      %p114 = scmp.ne.s32.totalorder %s103, %s106
      %p115 = scmp.eq.s32.totalorder %s28, 1
      %p116 = por %p114, %p115
      %p117 = scmp.ne.s32.totalorder %s106, %s107
      %p118 = scmp.eq.s32.totalorder %s28, 0
      %p119 = por %p117, %p118
      %p120 = scmp.ne.s32.totalorder %s106, %s107
      %p121 = scmp.eq.s32.totalorder %s29, 1
      %p122 = por %p120, %p121
      %p124 = scmp.ne.s32.totalorder %s107, %s123
      %p125 = scmp.eq.s32.totalorder %s29, 0
      %p126 = por %p124, %p125
      %s127 = ssub.s32 %s30, %s42
      %s128 = ssub.s32 %s31, %s38
      %s129 = sor.u32 %s127, %s128
      %p130 = scmp.eq.s32.totalorder %s129, 0
      %s132 = sadd.s32 %s131, 1
      %s133 = scalar_select %p130, %s131, %s132
      %p136 = pneg %p130
      %p137 = scmp.eq.s32.totalorder %s23, 1
      %p138 = por %p136, %p137
      %p139 = scmp.ne.s32.totalorder %s131, %s134
      %p140 = scmp.eq.s32.totalorder %s23, 0
      %p141 = por %p139, %p140
      %p142 = scmp.ne.s32.totalorder %s131, %s134
      %p143 = scmp.eq.s32.totalorder %s28, 1
      %p144 = por %p142, %p143
      %p145 = scmp.ne.s32.totalorder %s134, %s135
      %p146 = scmp.eq.s32.totalorder %s28, 0
      %p147 = por %p145, %p146
      %p148 = scmp.ne.s32.totalorder %s134, %s135
      %p149 = scmp.eq.s32.totalorder %s29, 1
      %p150 = por %p148, %p149
      %p152 = scmp.ne.s32.totalorder %s135, %s151
      %p153 = scmp.eq.s32.totalorder %s29, 0
      %p154 = por %p152, %p153
      %s155 = ssub.s32 %s30, %s42
      %s156 = ssub.s32 %s31, %s38
      %s157 = sor.u32 %s155, %s156
      %p158 = scmp.eq.s32.totalorder %s157, 0
      %s160 = sadd.s32 %s159, 1
      %s161 = scalar_select %p158, %s159, %s160
      %p164 = pneg %p158
      %p165 = scmp.eq.s32.totalorder %s23, 1
      %p166 = por %p164, %p165
      %p167 = scmp.ne.s32.totalorder %s159, %s162
      %p168 = scmp.eq.s32.totalorder %s23, 0
      %p169 = por %p167, %p168
      %p170 = scmp.ne.s32.totalorder %s159, %s162
      %p171 = scmp.eq.s32.totalorder %s28, 1
      %p172 = por %p170, %p171
      %p173 = scmp.ne.s32.totalorder %s162, %s163
      %p174 = scmp.eq.s32.totalorder %s28, 0
      %p175 = por %p173, %p174
      %p176 = scmp.ne.s32.totalorder %s162, %s163
      %p177 = scmp.eq.s32.totalorder %s29, 1
      %p178 = por %p176, %p177
      %p180 = scmp.ne.s32.totalorder %s163, %s179
      %p181 = scmp.eq.s32.totalorder %s29, 0
      %p182 = por %p180, %p181
      %p183 = scmp.le.s32.totalorder 1, %s23
      %p184 = scmp.lt.s32.totalorder %s23, 3
      %p185 = pnand %p183, %p184
      %p186 = pneg %p185
      // Predicated region
      $region9: #{tpu_custom_call.1} parent=5 // pred_check
        _
      $region10: #{tpu_custom_call.1} parent=5 // pred_check_branch
        %188 = sbr.rel (%p185) target = $region12
      $region11: #{tpu_custom_call.1} parent=5 // pred_region
        %s189 = ssub.s32 %s23, 1
      $region12: #{tpu_custom_call.1} parent=5 // pred_fallthru
        _
      %p190 = scmp.lt.s32.totalorder %s23, 2
      // Predicated region
      $region13: #{tpu_custom_call.1} parent=5 // pred_check
        %p191 = pneg %p190
      $region14: #{tpu_custom_call.1} parent=5 // pred_check_branch
        %193 = sbr.rel (%p191) target = $region16
      $region15: #{tpu_custom_call.1} parent=5 // pred_region
        // Predicated region
        $region17: #{tpu_custom_call.1} parent=15 // pred_check
          %p194 = pneg %p57
        $region18: #{tpu_custom_call.1} parent=15 // pred_check_branch
          %196 = sbr.rel (%p194) target = $region20
        $region19: #{tpu_custom_call.1} parent=15 // pred_region
          %s197 = sand.u32 %s47, 1
          %s198 = scalar_lea.sflag [#allocation3], %s197
          %s199 = sand.u32 %s47, 1
          %s200 = smul.addr %s199, 64
          %s201 = scalar_lea.vmem [#allocation2], %s200
          %203 = vsyncadd %s198, 0
          %s204 = smul.addr %s30, 8
          %s205 = sadd.s32 %s31, %s204
          %s206 = smul.addr %s205, 8
          %s207 = scalar_lea.hbm %s0, %s206
          %s208 = sshll.u32 %s207, 4
          %s209 = int_to_ptr.hbm [resolvable:$true] %s208
          %s210 = sshll.u32 %s201, 4
          %s211 = int_to_ptr.vmem [resolvable:$true] %s210
          %216 = dma.hbm_to_vmem [thread:$0]  %s209, 1024, %s211, %s198, 128, 128, 8
        $region20: #{tpu_custom_call.1} parent=15 // pred_fallthru
          _
        // Predicated region
        $region21: #{tpu_custom_call.1} parent=15 // pred_check
          %p217 = pneg %p85
        $region22: #{tpu_custom_call.1} parent=15 // pred_check_branch
          %219 = sbr.rel (%p217) target = $region24
        $region23: #{tpu_custom_call.1} parent=15 // pred_region
          %s220 = sand.u32 %s75, 1
          %s221 = scalar_lea.sflag [#allocation6], %s220
          %s222 = sand.u32 %s75, 1
          %s223 = smul.addr %s222, 128
          %s224 = scalar_lea.vmem [#allocation5], %s223
          %s225 = smul.u32 2, %s31
          %227 = vsyncadd %s221, 0
          %s228 = smul.addr %s30, 16
          %s229 = sadd.s32 %s225, %s228
          %s230 = smul.addr %s229, 8
          %s231 = scalar_lea.hbm %s1, %s230
          %s232 = sshll.u32 %s231, 4
          %s233 = int_to_ptr.hbm [resolvable:$true] %s232
          %s234 = sshll.u32 %s224, 4
          %s235 = int_to_ptr.vmem [resolvable:$true] %s234
          %240 = dma.hbm_to_vmem [thread:$0]  %s233, 2048, %s235, %s221, 128, 128, 8
        $region24: #{tpu_custom_call.1} parent=15 // pred_fallthru
          _
      $region16: #{tpu_custom_call.1} parent=5 // pred_fallthru
        _
      %p241 = scmp.le.s32.totalorder 1, %s23
      %p242 = scmp.lt.s32.totalorder %s23, 3
      %p243 = pnand %p241, %p242
      %p244 = pneg %p243
      // Predicated region
      $region25: #{tpu_custom_call.1} parent=5 // pred_check
        _
      $region26: #{tpu_custom_call.1} parent=5 // pred_check_branch
        %246 = sbr.rel (%p243) target = $region28
      $region27: #{tpu_custom_call.1} parent=5 // pred_region
        %s247 = ssub.s32 %s23, 1
        %s248 = sand.u32 %s50, 1
        %s249 = scalar_lea.sflag [#allocation3], %s248
        %s250 = sand.u32 %s50, 1
        %s251 = smul.addr %s250, 64
        %s252 = scalar_lea.vmem [#allocation2], %s251
        // Predicated region
        $region29: #{tpu_custom_call.1} parent=27 // pred_check
          %p253 = pneg %p63
        $region30: #{tpu_custom_call.1} parent=27 // pred_check_branch
          %255 = sbr.rel (%p253) target = $region32
        $region31: #{tpu_custom_call.1} parent=27 // pred_region
          %257 = dma.done %s249, 1024
        $region32: #{tpu_custom_call.1} parent=27 // pred_fallthru
          _
        %s258 = sand.u32 %s78, 1
        %s259 = scalar_lea.sflag [#allocation6], %s258
        %s260 = sand.u32 %s78, 1
        %s261 = smul.addr %s260, 128
        %s262 = scalar_lea.vmem [#allocation5], %s261
        // Predicated region
        $region33: #{tpu_custom_call.1} parent=27 // pred_check
          %p263 = pneg %p91
        $region34: #{tpu_custom_call.1} parent=27 // pred_check_branch
          %265 = sbr.rel (%p263) target = $region36
        $region35: #{tpu_custom_call.1} parent=27 // pred_region
          %267 = dma.done %s259, 2048
        $region36: #{tpu_custom_call.1} parent=27 // pred_fallthru
          _
        %s268 = sand.u32 %s50, 1
        %s269 = scalar_lea.sflag [#allocation3], %s268
        %s270 = sand.u32 %s50, 1
        %s271 = smul.addr %s270, 64
        %s272 = scalar_lea.vmem [#allocation2], %s271
        %p273 = pneg %p63
        %p274 = pneg %p60
        %s275 = sand.u32 %s78, 1
        %s276 = scalar_lea.sflag [#allocation6], %s275
        %s277 = sand.u32 %s78, 1
        %s278 = smul.addr %s277, 128
        %s279 = scalar_lea.vmem [#allocation5], %s278
        %p280 = pneg %p91
        %p281 = pneg %p88
        %p282 = pneg %p119
        %p283 = pneg %p116
        %s284 = sand.u32 %s106, 1
        %s285 = scalar_lea.sflag [#allocation4], %s284
        %s286 = sand.u32 %s106, 1
        %s287 = smul.addr %s286, 8
        %s288 = scalar_lea.vmem [#allocation7], %s287
        %p289 = pneg %p147
        %p290 = pneg %p144
        %p291 = scmp.lt.s32.totalorder %s32, 1
        %s292 = scalar_select %p291, %s32, 1
        %p293 = scmp.lt.s32.totalorder %s33, 0
        %s294 = scalar_select %p293, %s33, 0
        %s295 = sadd.s32 %s294, %s292
        %s296 = smul.addr %s295, 8
        %s297 = scalar_lea.vmem %s3, %s296
        %p298 = pneg %p175
        %p299 = pneg %p172
        %s300 = sand.u32 %s162, 1
        %s301 = scalar_lea.sflag [#allocation9], %s300
        %s302 = sand.u32 %s162, 1
        %s303 = smul.addr %s302, 8
        %s304 = scalar_lea.vmem [#allocation8], %s303
        %s305 = smul.u32 2, %s33
        %p306 = scmp.lt.s32.totalorder %s32, 1
        %s307 = scalar_select %p306, %s32, 1
        %p308 = scmp.lt.s32.totalorder %s33, 0
        %s309 = scalar_select %p308, %s33, 0
        %s310 = sadd.s32 %s309, %s307
        %s311 = smul.addr %s310, 8
        %s312 = scalar_lea.vmem %s3, %s311
        %v313 = vld [vmem:[%s252] sm:$0xff]
        %v314 = vld [vmem:[%s262] sm:$0xff]
        %v315 = vld [vmem:[%s262 + $0x8] sm:$0xff]
        %v316 = vmul.f32 %v314, %v314
        %v317 = vmul.f32 %v315, %v315
        %v318 = vadd.f32 %v316, %v317
        %319 = vadd.xlane.f32.xlu0 %v318
        %v320 = vpop.xlane.xlu0 %319
        %v321 = vrot.slane %v320, 4
        %v322 = vadd.f32 %v320, %v321
        %v323 = vrot.slane %v322, 2
        %v324 = vadd.f32 %v322, %v323
        %v325 = vrot.slane %v324, 1
        %v326 = vadd.f32 %v324, %v325
        %s327 = vtos %v326
        %v328 = vstv %s327
        %329 = vst [vmem:[%s304] sm:$0x1] %v328
        %s330 = scalar_lea.vmem %s252, 8 [#allocation2]
        %v331 = vld [vmem:[%s330] sm:$0xff]
        %s332 = scalar_lea.vmem %s262, 16 [#allocation5]
        %v333 = vld [vmem:[%s332] sm:$0xff]
        %v334 = vld [vmem:[%s332 + $0x8] sm:$0xff]
        %v335 = vsub.f32 %v331, %v313
        %v336 = vand.u32 2147483647, %v335
        %337 = vadd.xlane.f32.xlu0 %v336
        %v338 = vpop.xlane.xlu0 %337
        %v339 = vrot.slane %v338, 4
        %v340 = vadd.f32 %v338, %v339
        %v341 = vrot.slane %v340, 2
        %v342 = vadd.f32 %v340, %v341
        %v343 = vrot.slane %v342, 1
        %v344 = vadd.f32 %v342, %v343
        %s345 = vtos %v344
        %s346 = sadd.f32 %s345, 0.0
        %v347 = vmul.f32 %v314, %v333
        %v348 = vmul.f32 %v315, %v334
        %v349 = vadd.f32 %v347, %v348
        %350 = vadd.xlane.f32.xlu0 %v349
        %v351 = vpop.xlane.xlu0 %350
        %v352 = vrot.slane %v351, 4
        %v353 = vadd.f32 %v351, %v352
        %v354 = vrot.slane %v353, 2
        %v355 = vadd.f32 %v353, %v354
        %v356 = vrot.slane %v355, 1
        %v357 = vadd.f32 %v355, %v356
        %s358 = vtos %v357
        %v359 = vstv %s358
        %360 = vst [vmem:[%s312] sm:$0x1] %v359
        %v361 = vmul.f32 %v333, %v333
        %v362 = vmul.f32 %v334, %v334
        %v363 = vadd.f32 %v361, %v362
        %364 = vadd.xlane.f32.xlu0 %v363
        %v365 = vpop.xlane.xlu0 %364
        %v366 = vrot.slane %v365, 4
        %v367 = vadd.f32 %v365, %v366
        %v368 = vrot.slane %v367, 2
        %v369 = vadd.f32 %v367, %v368
        %v370 = vrot.slane %v369, 1
        %v371 = vadd.f32 %v369, %v370
        %s372 = vtos %v371
        %v373 = vstv %s372
        %374 = vst [vmem:[%s304 + $0x1] sm:$0x1] %v373
        %s375 = scalar_lea.vmem %s252, 16 [#allocation2]
        %v376 = vld [vmem:[%s375] sm:$0xff]
        %s377 = scalar_lea.vmem %s262, 32 [#allocation5]
        %v378 = vld [vmem:[%s377] sm:$0xff]
        %v379 = vld [vmem:[%s377 + $0x8] sm:$0xff]
        %v380 = vsub.f32 %v376, %v331
        %v381 = vand.u32 2147483647, %v380
        %382 = vadd.xlane.f32.xlu0 %v381
        %v383 = vpop.xlane.xlu0 %382
        %v384 = vrot.slane %v383, 4
        %v385 = vadd.f32 %v383, %v384
        %v386 = vrot.slane %v385, 2
        %v387 = vadd.f32 %v385, %v386
        %v388 = vrot.slane %v387, 1
        %v389 = vadd.f32 %v387, %v388
        %s390 = vtos %v389
        %s391 = sadd.f32 %s346, %s390
        %v392 = vmul.f32 %v333, %v378
        %v393 = vmul.f32 %v334, %v379
        %v394 = vadd.f32 %v392, %v393
        %395 = vadd.xlane.f32.xlu0 %v394
        %v396 = vpop.xlane.xlu0 %395
        %v397 = vrot.slane %v396, 4
        %v398 = vadd.f32 %v396, %v397
        %v399 = vrot.slane %v398, 2
        %v400 = vadd.f32 %v398, %v399
        %v401 = vrot.slane %v400, 1
        %v402 = vadd.f32 %v400, %v401
        %s403 = vtos %v402
        %v404 = vstv %s403
        %405 = vst [vmem:[%s312 + $0x1] sm:$0x1] %v404
        %v406 = vmul.f32 %v378, %v378
        %v407 = vmul.f32 %v379, %v379
        %v408 = vadd.f32 %v406, %v407
        %409 = vadd.xlane.f32.xlu0 %v408
        %v410 = vpop.xlane.xlu0 %409
        %v411 = vrot.slane %v410, 4
        %v412 = vadd.f32 %v410, %v411
        %v413 = vrot.slane %v412, 2
        %v414 = vadd.f32 %v412, %v413
        %v415 = vrot.slane %v414, 1
        %v416 = vadd.f32 %v414, %v415
        %s417 = vtos %v416
        %v418 = vstv %s417
        %419 = vst [vmem:[%s304 + $0x2] sm:$0x1] %v418
        %s420 = scalar_lea.vmem %s252, 24 [#allocation2]
        %v421 = vld [vmem:[%s420] sm:$0xff]
        %s422 = scalar_lea.vmem %s262, 48 [#allocation5]
        %v423 = vld [vmem:[%s422] sm:$0xff]
        %v424 = vld [vmem:[%s422 + $0x8] sm:$0xff]
        %v425 = vsub.f32 %v421, %v376
        %v426 = vand.u32 2147483647, %v425
        %427 = vadd.xlane.f32.xlu0 %v426
        %v428 = vpop.xlane.xlu0 %427
        %v429 = vrot.slane %v428, 4
        %v430 = vadd.f32 %v428, %v429
        %v431 = vrot.slane %v430, 2
        %v432 = vadd.f32 %v430, %v431
        %v433 = vrot.slane %v432, 1
        %v434 = vadd.f32 %v432, %v433
        %s435 = vtos %v434
        %s436 = sadd.f32 %s391, %s435
        %v437 = vmul.f32 %v378, %v423
        %v438 = vmul.f32 %v379, %v424
        %v439 = vadd.f32 %v437, %v438
        %440 = vadd.xlane.f32.xlu0 %v439
        %v441 = vpop.xlane.xlu0 %440
        %v442 = vrot.slane %v441, 4
        %v443 = vadd.f32 %v441, %v442
        %v444 = vrot.slane %v443, 2
        %v445 = vadd.f32 %v443, %v444
        %v446 = vrot.slane %v445, 1
        %v447 = vadd.f32 %v445, %v446
        %s448 = vtos %v447
        %v449 = vstv %s448
        %450 = vst [vmem:[%s312 + $0x2] sm:$0x1] %v449
        %v451 = vmul.f32 %v423, %v423
        %v452 = vmul.f32 %v424, %v424
        %v453 = vadd.f32 %v451, %v452
        %454 = vadd.xlane.f32.xlu0 %v453
        %v455 = vpop.xlane.xlu0 %454
        %v456 = vrot.slane %v455, 4
        %v457 = vadd.f32 %v455, %v456
        %v458 = vrot.slane %v457, 2
        %v459 = vadd.f32 %v457, %v458
        %v460 = vrot.slane %v459, 1
        %v461 = vadd.f32 %v459, %v460
        %s462 = vtos %v461
        %v463 = vstv %s462
        %464 = vst [vmem:[%s304 + $0x3] sm:$0x1] %v463
        %s465 = scalar_lea.vmem %s252, 32 [#allocation2]
        %v466 = vld [vmem:[%s465] sm:$0xff]
        %s467 = scalar_lea.vmem %s262, 64 [#allocation5]
        %v468 = vld [vmem:[%s467] sm:$0xff]
        %v469 = vld [vmem:[%s467 + $0x8] sm:$0xff]
        %v470 = vsub.f32 %v466, %v421
        %v471 = vand.u32 2147483647, %v470
        %472 = vadd.xlane.f32.xlu0 %v471
        %v473 = vpop.xlane.xlu0 %472
        %v474 = vrot.slane %v473, 4
        %v475 = vadd.f32 %v473, %v474
        %v476 = vrot.slane %v475, 2
        %v477 = vadd.f32 %v475, %v476
        %v478 = vrot.slane %v477, 1
        %v479 = vadd.f32 %v477, %v478
        %s480 = vtos %v479
        %s481 = sadd.f32 %s436, %s480
        %v482 = vmul.f32 %v423, %v468
        %v483 = vmul.f32 %v424, %v469
        %v484 = vadd.f32 %v482, %v483
        %485 = vadd.xlane.f32.xlu0 %v484
        %v486 = vpop.xlane.xlu0 %485
        %v487 = vrot.slane %v486, 4
        %v488 = vadd.f32 %v486, %v487
        %v489 = vrot.slane %v488, 2
        %v490 = vadd.f32 %v488, %v489
        %v491 = vrot.slane %v490, 1
        %v492 = vadd.f32 %v490, %v491
        %s493 = vtos %v492
        %v494 = vstv %s493
        %495 = vst [vmem:[%s312 + $0x3] sm:$0x1] %v494
        %v496 = vmul.f32 %v468, %v468
        %v497 = vmul.f32 %v469, %v469
        %v498 = vadd.f32 %v496, %v497
        %499 = vadd.xlane.f32.xlu0 %v498
        %v500 = vpop.xlane.xlu0 %499
        %v501 = vrot.slane %v500, 4
        %v502 = vadd.f32 %v500, %v501
        %v503 = vrot.slane %v502, 2
        %v504 = vadd.f32 %v502, %v503
        %v505 = vrot.slane %v504, 1
        %v506 = vadd.f32 %v504, %v505
        %s507 = vtos %v506
        %v508 = vstv %s507
        %509 = vst [vmem:[%s304 + $0x4] sm:$0x1] %v508
        %s510 = scalar_lea.vmem %s252, 40 [#allocation2]
        %v511 = vld [vmem:[%s510] sm:$0xff]
        %s512 = scalar_lea.vmem %s262, 80 [#allocation5]
        %v513 = vld [vmem:[%s512] sm:$0xff]
        %v514 = vld [vmem:[%s512 + $0x8] sm:$0xff]
        %v515 = vsub.f32 %v511, %v466
        %v516 = vand.u32 2147483647, %v515
        %517 = vadd.xlane.f32.xlu0 %v516
        %v518 = vpop.xlane.xlu0 %517
        %v519 = vrot.slane %v518, 4
        %v520 = vadd.f32 %v518, %v519
        %v521 = vrot.slane %v520, 2
        %v522 = vadd.f32 %v520, %v521
        %v523 = vrot.slane %v522, 1
        %v524 = vadd.f32 %v522, %v523
        %s525 = vtos %v524
        %s526 = sadd.f32 %s481, %s525
        %v527 = vmul.f32 %v468, %v513
        %v528 = vmul.f32 %v469, %v514
        %v529 = vadd.f32 %v527, %v528
        %530 = vadd.xlane.f32.xlu0 %v529
        %v531 = vpop.xlane.xlu0 %530
        %v532 = vrot.slane %v531, 4
        %v533 = vadd.f32 %v531, %v532
        %v534 = vrot.slane %v533, 2
        %v535 = vadd.f32 %v533, %v534
        %v536 = vrot.slane %v535, 1
        %v537 = vadd.f32 %v535, %v536
        %s538 = vtos %v537
        %v539 = vstv %s538
        %540 = vst [vmem:[%s312 + $0x4] sm:$0x1] %v539
        %v541 = vmul.f32 %v513, %v513
        %v542 = vmul.f32 %v514, %v514
        %v543 = vadd.f32 %v541, %v542
        %544 = vadd.xlane.f32.xlu0 %v543
        %v545 = vpop.xlane.xlu0 %544
        %v546 = vrot.slane %v545, 4
        %v547 = vadd.f32 %v545, %v546
        %v548 = vrot.slane %v547, 2
        %v549 = vadd.f32 %v547, %v548
        %v550 = vrot.slane %v549, 1
        %v551 = vadd.f32 %v549, %v550
        %s552 = vtos %v551
        %v553 = vstv %s552
        %554 = vst [vmem:[%s304 + $0x5] sm:$0x1] %v553
        %s555 = scalar_lea.vmem %s252, 48 [#allocation2]
        %v556 = vld [vmem:[%s555] sm:$0xff]
        %s557 = scalar_lea.vmem %s262, 96 [#allocation5]
        %v558 = vld [vmem:[%s557] sm:$0xff]
        %v559 = vld [vmem:[%s557 + $0x8] sm:$0xff]
        %v560 = vsub.f32 %v556, %v511
        %v561 = vand.u32 2147483647, %v560
        %562 = vadd.xlane.f32.xlu0 %v561
        %v563 = vpop.xlane.xlu0 %562
        %v564 = vrot.slane %v563, 4
        %v565 = vadd.f32 %v563, %v564
        %v566 = vrot.slane %v565, 2
        %v567 = vadd.f32 %v565, %v566
        %v568 = vrot.slane %v567, 1
        %v569 = vadd.f32 %v567, %v568
        %s570 = vtos %v569
        %s571 = sadd.f32 %s526, %s570
        %v572 = vmul.f32 %v513, %v558
        %v573 = vmul.f32 %v514, %v559
        %v574 = vadd.f32 %v572, %v573
        %575 = vadd.xlane.f32.xlu0 %v574
        %v576 = vpop.xlane.xlu0 %575
        %v577 = vrot.slane %v576, 4
        %v578 = vadd.f32 %v576, %v577
        %v579 = vrot.slane %v578, 2
        %v580 = vadd.f32 %v578, %v579
        %v581 = vrot.slane %v580, 1
        %v582 = vadd.f32 %v580, %v581
        %s583 = vtos %v582
        %v584 = vstv %s583
        %585 = vst [vmem:[%s312 + $0x5] sm:$0x1] %v584
        %v586 = vmul.f32 %v558, %v558
        %v587 = vmul.f32 %v559, %v559
        %v588 = vadd.f32 %v586, %v587
        %589 = vadd.xlane.f32.xlu0 %v588
        %v590 = vpop.xlane.xlu0 %589
        %v591 = vrot.slane %v590, 4
        %v592 = vadd.f32 %v590, %v591
        %v593 = vrot.slane %v592, 2
        %v594 = vadd.f32 %v592, %v593
        %v595 = vrot.slane %v594, 1
        %v596 = vadd.f32 %v594, %v595
        %s597 = vtos %v596
        %v598 = vstv %s597
        %599 = vst [vmem:[%s304 + $0x6] sm:$0x1] %v598
        %s600 = scalar_lea.vmem %s252, 56 [#allocation2]
        %v601 = vld [vmem:[%s600] sm:$0xff]
        %s602 = scalar_lea.vmem %s262, 112 [#allocation5]
        %v603 = vld [vmem:[%s602] sm:$0xff]
        %v604 = vld [vmem:[%s602 + $0x8] sm:$0xff]
        %v605 = vsub.f32 %v601, %v556
        %v606 = vand.u32 2147483647, %v605
        %607 = vadd.xlane.f32.xlu0 %v606
        %v608 = vpop.xlane.xlu0 %607
        %v609 = vrot.slane %v608, 4
        %v610 = vadd.f32 %v608, %v609
        %v611 = vrot.slane %v610, 2
        %v612 = vadd.f32 %v610, %v611
        %v613 = vrot.slane %v612, 1
        %v614 = vadd.f32 %v612, %v613
        %s615 = vtos %v614
        %s616 = sadd.f32 %s571, %s615
        %v617 = vmul.f32 %v558, %v603
        %v618 = vmul.f32 %v559, %v604
        %v619 = vadd.f32 %v617, %v618
        %620 = vadd.xlane.f32.xlu0 %v619
        %v621 = vpop.xlane.xlu0 %620
        %v622 = vrot.slane %v621, 4
        %v623 = vadd.f32 %v621, %v622
        %v624 = vrot.slane %v623, 2
        %v625 = vadd.f32 %v623, %v624
        %v626 = vrot.slane %v625, 1
        %v627 = vadd.f32 %v625, %v626
        %s628 = vtos %v627
        %v629 = vstv %s628
        %630 = vst [vmem:[%s312 + $0x6] sm:$0x1] %v629
        %v631 = vmul.f32 %v603, %v603
        %v632 = vmul.f32 %v604, %v604
        %v633 = vadd.f32 %v631, %v632
        %634 = vadd.xlane.f32.xlu0 %v633
        %v635 = vpop.xlane.xlu0 %634
        %v636 = vrot.slane %v635, 4
        %v637 = vadd.f32 %v635, %v636
        %v638 = vrot.slane %v637, 2
        %v639 = vadd.f32 %v637, %v638
        %v640 = vrot.slane %v639, 1
        %v641 = vadd.f32 %v639, %v640
        %s642 = vtos %v641
        %v643 = vstv %s642
        %644 = vst [vmem:[%s304 + $0x7] sm:$0x1] %v643
        %v645 = vstv %s616
        %646 = vst [vmem:[%s288] sm:$0xff] %v645
        %s647 = sand.u32 %s106, 1
        %s648 = scalar_lea.sflag [#allocation4], %s647
        %s649 = sand.u32 %s106, 1
        %s650 = smul.addr %s649, 8
        %s651 = scalar_lea.vmem [#allocation7], %s650
        %p652 = scmp.lt.s32.totalorder %s32, 1
        %s653 = scalar_select %p652, %s32, 1
        %p654 = scmp.lt.s32.totalorder %s33, 0
        %s655 = scalar_select %p654, %s33, 0
        %s656 = sadd.s32 %s655, %s653
        %s657 = smul.addr %s656, 8
        %s658 = scalar_lea.vmem %s3, %s657
        %s659 = sand.u32 %s162, 1
        %s660 = scalar_lea.sflag [#allocation9], %s659
        %s661 = sand.u32 %s162, 1
        %s662 = smul.addr %s661, 8
        %s663 = scalar_lea.vmem [#allocation8], %s662
        // Predicated region
        $region37: #{tpu_custom_call.1} parent=27 // pred_check
          %p664 = pneg %p116
        $region38: #{tpu_custom_call.1} parent=27 // pred_check_branch
          %666 = sbr.rel (%p664) target = $region40
        $region39: #{tpu_custom_call.1} parent=27 // pred_region
          %668 = vsyncadd %s648, 0
          %s669 = sadd.s32 %s33, %s32
          %s670 = smul.addr %s669, 8
          %s671 = scalar_lea.hbm %s2, %s670
          %s673 = sshll.u32 %s651, 4
          %s674 = int_to_ptr.vmem [resolvable:$true] %s673
          %s675 = sshll.u32 %s671, 4
          %s676 = int_to_ptr.hbm [resolvable:$true] %s675
          %678 = dma.vmem_to_hbm [thread:$0]  %s674, 128, %s676, %s648
        $region40: #{tpu_custom_call.1} parent=27 // pred_fallthru
          _
        // Predicated region
        $region41: #{tpu_custom_call.1} parent=27 // pred_check
          %p679 = pneg %p144
        $region42: #{tpu_custom_call.1} parent=27 // pred_check_branch
          %681 = sbr.rel (%p679) target = $region44
        $region43: #{tpu_custom_call.1} parent=27 // pred_region
          _
        $region44: #{tpu_custom_call.1} parent=27 // pred_fallthru
          _
        // Predicated region
        $region45: #{tpu_custom_call.1} parent=27 // pred_check
          %p682 = pneg %p172
        $region46: #{tpu_custom_call.1} parent=27 // pred_check_branch
          %684 = sbr.rel (%p682) target = $region48
        $region47: #{tpu_custom_call.1} parent=27 // pred_region
          %686 = vsyncadd %s660, 0
          %s687 = sadd.s32 %s33, %s32
          %s688 = smul.addr %s687, 8
          %s689 = scalar_lea.hbm %s4, %s688
          %s691 = sshll.u32 %s663, 4
          %s692 = int_to_ptr.vmem [resolvable:$true] %s691
          %s693 = sshll.u32 %s689, 4
          %s694 = int_to_ptr.hbm [resolvable:$true] %s693
          %696 = dma.vmem_to_hbm [thread:$0]  %s692, 128, %s694, %s660
        $region48: #{tpu_custom_call.1} parent=27 // pred_fallthru
          _
      $region28: #{tpu_custom_call.1} parent=5 // pred_fallthru
        _
      %p697 = scmp.le.s32.totalorder 2, %s23
      // Predicated region
      $region49: #{tpu_custom_call.1} parent=5 // pred_check
        %p698 = pneg %p697
      $region50: #{tpu_custom_call.1} parent=5 // pred_check_branch
        %700 = sbr.rel (%p698) target = $region52
      $region51: #{tpu_custom_call.1} parent=5 // pred_region
        %s701 = ssub.s32 %s23, 2
        // Predicated region
        $region53: #{tpu_custom_call.1} parent=51 // pred_check
          %p702 = pneg %p122
        $region54: #{tpu_custom_call.1} parent=51 // pred_check_branch
          %704 = sbr.rel (%p702) target = $region56
        $region55: #{tpu_custom_call.1} parent=51 // pred_region
          %s705 = sand.u32 %s107, 1
          %s706 = scalar_lea.sflag [#allocation4], %s705
          %s707 = sand.u32 %s107, 1
          %s708 = smul.addr %s707, 8
          %s709 = scalar_lea.vmem [#allocation7], %s708
          %711 = dma.done %s706, 128
        $region56: #{tpu_custom_call.1} parent=51 // pred_fallthru
          _
        // Predicated region
        $region57: #{tpu_custom_call.1} parent=51 // pred_check
          %p712 = pneg %p150
        $region58: #{tpu_custom_call.1} parent=51 // pred_check_branch
          %714 = sbr.rel (%p712) target = $region60
        $region59: #{tpu_custom_call.1} parent=51 // pred_region
          %p715 = scmp.lt.s32.totalorder %s34, 1
          %s716 = scalar_select %p715, %s34, 1
          %p717 = scmp.lt.s32.totalorder %s35, 0
          %s718 = scalar_select %p717, %s35, 0
          %s719 = sadd.s32 %s718, %s716
          %s720 = smul.addr %s719, 8
          %s721 = scalar_lea.vmem %s3, %s720
        $region60: #{tpu_custom_call.1} parent=51 // pred_fallthru
          _
        // Predicated region
        $region61: #{tpu_custom_call.1} parent=51 // pred_check
          %p722 = pneg %p178
        $region62: #{tpu_custom_call.1} parent=51 // pred_check_branch
          %724 = sbr.rel (%p722) target = $region64
        $region63: #{tpu_custom_call.1} parent=51 // pred_region
          %s725 = sand.u32 %s163, 1
          %s726 = scalar_lea.sflag [#allocation9], %s725
          %s727 = sand.u32 %s163, 1
          %s728 = smul.addr %s727, 8
          %s729 = scalar_lea.vmem [#allocation8], %s728
          %731 = dma.done %s726, 128
        $region64: #{tpu_custom_call.1} parent=51 // pred_fallthru
          _
      $region52: #{tpu_custom_call.1} parent=5 // pred_fallthru
        _
    $region6: #{tpu_custom_call.1} parent=1 // loop_footer
      %s27 = sadd.s32 1, %s23
    $region7: #{tpu_custom_call.1} parent=1 // loop_footer_branch
      %22 = sbr.rel target = $region3
    $region8: #{tpu_custom_call.1} parent=1 // loop_exit
      _
    %732 = vsyncpa [#allocation3], 1
    %s733 = scalar_lea.sflag [#allocation3], 1
    %734 = vsyncpa %s733, 1
    %735 = vsyncpa [#allocation6], 1
    %s736 = scalar_lea.sflag [#allocation6], 1
    %737 = vsyncpa %s736, 1
    %738 = vsyncpa [#allocation4], 1
    %s739 = scalar_lea.sflag [#allocation4], 1
    %740 = vsyncpa %s739, 1
    %741 = vsyncpa [#allocation9], 1
    %s742 = scalar_lea.sflag [#allocation9], 1
    %743 = vsyncpa %s742, 1

</llo_original>
